<compile_context>
chip_gen: v7x
topology: tpu7x:2x2x1
jax: 0.10.0
libtpu: 0.0.40
codegen_flags: <defaults>
</compile_context>

<pallas_src>
import math

import jax
import jax.numpy as jnp
from jax.experimental import pallas as pl
from jax.experimental.pallas import tpu as pltpu

LP = 128  # padded feature width (one full lane tile)


def _round_up(n, m):
    return ((n + m - 1) // m) * m


def _cdiv(a, b):
    return -(-a // b)


def mlp_kernel(x_ref, w_ref, v_ref, o_ref, xs_ref):
    """x_ref : (TB, L)    f32   input rows, feature dim NOT padded
       w_ref : (4*Lp, Lp) bf16  packed [W1; W2; W3; w4-row-block]
       v_ref : (8, Lp)    f32   rows [b1, b2, b3, b4(+zeros), 0, 0, 0, 0]
       o_ref : (1, 1, TB) f32   lane-dense sigmoid outputs for this batch tile
       xs_ref: (TB, Lp)   bf16  scratch: lane-padded bf16 copy of the x tile"""
    L = x_ref.shape[1]
    Lp = w_ref.shape[1]

    # Lane-pad x to Lp inside the kernel. The scratch is zeroed every step so the
    # padded lanes are explicit zeros regardless of grid splitting across cores.
    xs_ref[...] = jnp.zeros_like(xs_ref)
    xs_ref[:, 0:L] = x_ref[...].astype(xs_ref.dtype)
    x = xs_ref[...]                                   # (TB, Lp) bf16

    b1 = v_ref[0:1, :]
    b2 = v_ref[1:2, :]
    b3 = v_ref[2:3, :]
    b4 = v_ref[3:4, 0:1]                              # (1, 1) final-layer bias

    # Three Linear+ReLU layers: bf16 MXU dots, f32 accumulation + f32 epilogue.
    h = jnp.dot(x, w_ref[0:Lp, :], preferred_element_type=jnp.float32)
    h = jnp.maximum(h + b1, 0.0).astype(jnp.bfloat16)
    h = jnp.dot(h, w_ref[Lp:2 * Lp, :], preferred_element_type=jnp.float32)
    h = jnp.maximum(h + b2, 0.0).astype(jnp.bfloat16)
    h = jnp.dot(h, w_ref[2 * Lp:3 * Lp, :], preferred_element_type=jnp.float32)
    h = jnp.maximum(h + b3, 0.0).astype(jnp.bfloat16)

    # Final (Lp -> 1) layer emitted lane-dense: contract the lane dim of h against
    # the packed w4 row block -> (8, TB); row 0 holds the logits for every row of
    # the batch tile (rows 1..7 of the block are zero).
    w4blk = w_ref[3 * Lp:3 * Lp + 8, :]               # (8, Lp) bf16, row 0 = w4
    z = jax.lax.dot_general(w4blk, h, (((1,), (1,)), ((), ())),
                            preferred_element_type=jnp.float32)   # (8, TB) f32
    logits = z[0:1, :] + b4                           # (1, TB)
    o_ref[0] = jax.nn.sigmoid(logits).astype(o_ref.dtype)


def pack_params(params, layer_size, lp=LP):
    """Zero-pad weights/biases to the (lp, lp) layout and coalesce into 2 arrays.
    Weights are stored in bf16 (MXU operands), biases in f32 (VPU epilogue)."""
    L = layer_size
    assert L <= lp

    def pad_mat(w):                                   # (r, c) -> (lp, lp)
        return jnp.zeros((lp, lp), jnp.float32).at[:w.shape[0], :w.shape[1]].set(w)

    w4_block = jnp.zeros((lp, lp), jnp.float32).at[0, :L].set(
        params["w4"].reshape(-1))                     # row 0 = w4, rest 0

    W = jnp.concatenate(
        [pad_mat(params["w1"]), pad_mat(params["w2"]), pad_mat(params["w3"]),
         w4_block], axis=0).astype(jnp.bfloat16)      # (4*lp, lp) bf16

    def pad_row(r):
        r = jnp.asarray(r, jnp.float32).reshape(-1)
        return jnp.zeros((lp,), jnp.float32).at[:r.shape[0]].set(r)

    V = jnp.stack([pad_row(params["b1"]), pad_row(params["b2"]),
                   pad_row(params["b3"]), pad_row(params["b4"])]
                  + [jnp.zeros((lp,), jnp.float32)] * 4)   # (8, lp) f32
    return {"W": W, "V": V}


def mlp_forward(x, packed, *, tile_b=4096):
    """x: (B, L) float. packed: output of pack_params. Returns (B, 1) float32."""
    B, L = x.shape
    Lp = packed["W"].shape[1]
    assert L <= Lp

    # Tile selection: cap the batch tile at `tile_b`, keep >= 2 grid steps when
    # there is enough work (v7x: 2 TensorCores), and size TB so batch padding
    # waste stays below one sublane group per step.
    B8 = _round_up(B, 8)
    n_steps = _cdiv(B8, tile_b)
    if n_steps == 1 and B8 >= 16:
        n_steps = 2
    TB = _round_up(_cdiv(B8, n_steps), 8)
    n_steps = _cdiv(B8, TB)
    B_pad = n_steps * TB

    x = x.astype(jnp.float32)
    if B_pad != B:
        x = jnp.zeros((B_pad, L), jnp.float32).at[:B].set(x)   # batch pad only

    out = pl.pallas_call(
        mlp_kernel,
        out_shape=jax.ShapeDtypeStruct((n_steps, 1, TB), jnp.float32),
        grid=(n_steps,),
        in_specs=[
            pl.BlockSpec((TB, L), lambda i: (i, 0)),             # x tile (unpadded feat)
            pl.BlockSpec(packed["W"].shape, lambda i: (0, 0)),   # resident packed weights
            pl.BlockSpec(packed["V"].shape, lambda i: (0, 0)),   # resident packed biases
        ],
        out_specs=pl.BlockSpec((1, 1, TB), lambda i: (i, 0, 0)),
        scratch_shapes=[pltpu.VMEM((TB, Lp), jnp.bfloat16)],
        compiler_params=pltpu.CompilerParams(
            dimension_semantics=("parallel",)),
    )(x, packed["W"], packed["V"])

    return out.reshape(B_pad, 1)[:B]


def init_linear(key, fan_in, fan_out):
    """Deterministic init mimicking nn.Linear default (uniform +-1/sqrt(fan_in)).
    Weight returned as (in, out) so the math is x @ W."""
    kw, kb = jax.random.split(key)
    bound = 1.0 / math.sqrt(fan_in)
    w = jax.random.uniform(kw, (fan_in, fan_out), jnp.float32, -bound, bound)
    b = jax.random.uniform(kb, (fan_out,), jnp.float32, -bound, bound)
    return w, b


def make_params(key, layer_size):
    L = layer_size
    keys = jax.random.split(key, 4)
    w1, b1 = init_linear(keys[0], L, L)
    w2, b2 = init_linear(keys[1], L, L)
    w3, b3 = init_linear(keys[2], L, L)
    w4, b4 = init_linear(keys[3], L, 1)
    return dict(w1=w1, b1=b1, w2=w2, b2=b2, w3=w3, b3=b3, w4=w4, b4=b4)


def mlp_reference(x, p):
    h = jnp.maximum(x @ p["w1"] + p["b1"], 0.0)
    h = jnp.maximum(h @ p["w2"] + p["b2"], 0.0)
    h = jnp.maximum(h @ p["w3"] + p["b3"], 0.0)
    return jax.nn.sigmoid(h @ p["w4"] + p["b4"])


if __name__ == "__main__":
    cols, rows = 8, 4                 # small synthetic board -> layer_size = 33
    layer_size = cols * rows + 1

    key = jax.random.PRNGKey(0)
    kp, kx, kx2 = jax.random.split(key, 3)
    params = make_params(kp, layer_size)
    packed = pack_params(params, layer_size)

    # Small-batch check (single grid step).
    batch = 2
    x = jax.random.normal(kx, (batch, layer_size), jnp.float32)
    out = jax.block_until_ready(mlp_forward(x, packed))
    ref = mlp_reference(x, params)
    assert out.shape == (batch, 1), out.shape
    assert jnp.allclose(out, ref, atol=2e-2), float(jnp.max(jnp.abs(out - ref)))

    # Larger batch: exercises the multi-step parallel grid, in-kernel feature
    # padding, batch-tail padding and the lane-dense output path.
    batch2 = 300
    x2 = jax.random.normal(kx2, (batch2, layer_size), jnp.float32)
    out2 = jax.block_until_ready(mlp_forward(x2, packed))
    ref2 = mlp_reference(x2, params)
    assert out2.shape == (batch2, 1), out2.shape
    assert jnp.allclose(out2, ref2, atol=2e-2), float(jnp.max(jnp.abs(out2 - ref2)))

    print("KERNEL_OK")
</pallas_src>

<mosaic_0001>
module attributes {stable_mosaic.version = 11 : i64} {
  func.func @mlp_kernel(%arg0: i32, %arg1: memref<8x33xf32, #tpu.memory_space<vmem>>, %arg2: memref<512x128xbf16, #tpu.memory_space<vmem>>, %arg3: memref<8x128xf32, #tpu.memory_space<vmem>>, %arg4: memref<1x1x8xf32, #tpu.memory_space<vmem>>, %arg5: memref<8x128xbf16, #tpu.memory_space<vmem>>) attributes {dimension_semantics = [#tpu.dimension_semantics<parallel>], iteration_bounds = array<i64: 1>, scalar_prefetch = 0 : i64, scratch_operands = 1 : i64, tpu.core_type = #tpu.core_type<tc>, window_params = [{transform_indices = @transform_0, window_bounds = array<i64: 8, 33>}, {pipeline_mode = #tpu.pipeline_mode<synchronous>, transform_indices = @transform_1, window_bounds = array<i64: 512, 128>}, {pipeline_mode = #tpu.pipeline_mode<synchronous>, transform_indices = @transform_2, window_bounds = array<i64: 8, 128>}, {transform_indices = @transform_3, window_bounds = array<i64: 1, 1, 8>}]} {
    %cst = arith.constant 0.000000e+00 : bf16
    %0 = vector.broadcast %cst : bf16 to vector<8x128xbf16>
    %c0 = arith.constant 0 : index
    %c0_0 = arith.constant 0 : index
    %1 = vector.load %arg5[%c0, %c0_0] : memref<8x128xbf16, #tpu.memory_space<vmem>>, vector<8x128xbf16>
    tpu.vector_store %arg5[%c0, %c0_0], %0 {strides = array<i32>} : memref<8x128xbf16, #tpu.memory_space<vmem>>, vector<8x128xbf16>,
    %c0_1 = arith.constant 0 : index
    %c0_2 = arith.constant 0 : index
    %2 = vector.load %arg1[%c0_1, %c0_2] : memref<8x33xf32, #tpu.memory_space<vmem>>, vector<8x33xf32>
    %3 = arith.truncf %2 : vector<8x33xf32> to vector<8x33xbf16>
    %c0_3 = arith.constant 0 : index
    %c0_4 = arith.constant 0 : index
    %4 = vector.load %arg5[%c0_3, %c0_4] : memref<8x128xbf16, #tpu.memory_space<vmem>>, vector<8x33xbf16>
    tpu.vector_store %arg5[%c0_3, %c0_4], %3 {strides = array<i32>} : memref<8x128xbf16, #tpu.memory_space<vmem>>, vector<8x33xbf16>,
    %c0_5 = arith.constant 0 : index
    %c0_6 = arith.constant 0 : index
    %5 = vector.load %arg5[%c0_5, %c0_6] : memref<8x128xbf16, #tpu.memory_space<vmem>>, vector<8x128xbf16>
    %c0_7 = arith.constant 0 : index
    %c0_8 = arith.constant 0 : index
    %6 = vector.load %arg3[%c0_7, %c0_8] : memref<8x128xf32, #tpu.memory_space<vmem>>, vector<1x128xf32>
    %c1 = arith.constant 1 : index
    %c0_9 = arith.constant 0 : index
    %7 = vector.load %arg3[%c1, %c0_9] : memref<8x128xf32, #tpu.memory_space<vmem>>, vector<1x128xf32>
    %c2 = arith.constant 2 : index
    %c0_10 = arith.constant 0 : index
    %8 = vector.load %arg3[%c2, %c0_10] : memref<8x128xf32, #tpu.memory_space<vmem>>, vector<1x128xf32>
    %c3 = arith.constant 3 : index
    %c0_11 = arith.constant 0 : index
    %9 = vector.load %arg3[%c3, %c0_11] : memref<8x128xf32, #tpu.memory_space<vmem>>, vector<1x1xf32>
    %c0_12 = arith.constant 0 : index
    %c0_13 = arith.constant 0 : index
    %10 = vector.load %arg2[%c0_12, %c0_13] : memref<512x128xbf16, #tpu.memory_space<vmem>>, vector<128x128xbf16>
    %cst_14 = arith.constant dense<0.000000e+00> : vector<8x128xf32>
    %11 = tpu.matmul %5, %10, %cst_14 {dimension_numbers = #tpu.dot_dimension_numbers<[1], [0], [0], [1], [0, 0, 1, 1], [], []>} : vector<8x128xbf16>, vector<128x128xbf16>, vector<8x128xf32> -> vector<8x128xf32>
    %12 = vector.broadcast %6 : vector<1x128xf32> to vector<8x128xf32>
    %13 = arith.addf %11, %12 : vector<8x128xf32>
    %cst_15 = arith.constant 0.000000e+00 : f32
    %14 = vector.broadcast %cst_15 : f32 to vector<8x128xf32>
    %15 = arith.maximumf %13, %14 : vector<8x128xf32>
    %16 = arith.truncf %15 : vector<8x128xf32> to vector<8x128xbf16>
    %c128 = arith.constant 128 : index
    %c0_16 = arith.constant 0 : index
    %17 = vector.load %arg2[%c128, %c0_16] : memref<512x128xbf16, #tpu.memory_space<vmem>>, vector<128x128xbf16>
    %cst_17 = arith.constant dense<0.000000e+00> : vector<8x128xf32>
    %18 = tpu.matmul %16, %17, %cst_17 {dimension_numbers = #tpu.dot_dimension_numbers<[1], [0], [0], [1], [0, 0, 1, 1], [], []>} : vector<8x128xbf16>, vector<128x128xbf16>, vector<8x128xf32> -> vector<8x128xf32>
    %19 = vector.broadcast %7 : vector<1x128xf32> to vector<8x128xf32>
    %20 = arith.addf %18, %19 : vector<8x128xf32>
    %cst_18 = arith.constant 0.000000e+00 : f32
    %21 = vector.broadcast %cst_18 : f32 to vector<8x128xf32>
    %22 = arith.maximumf %20, %21 : vector<8x128xf32>
    %23 = arith.truncf %22 : vector<8x128xf32> to vector<8x128xbf16>
    %c256 = arith.constant 256 : index
    %c0_19 = arith.constant 0 : index
    %24 = vector.load %arg2[%c256, %c0_19] : memref<512x128xbf16, #tpu.memory_space<vmem>>, vector<128x128xbf16>
    %cst_20 = arith.constant dense<0.000000e+00> : vector<8x128xf32>
    %25 = tpu.matmul %23, %24, %cst_20 {dimension_numbers = #tpu.dot_dimension_numbers<[1], [0], [0], [1], [0, 0, 1, 1], [], []>} : vector<8x128xbf16>, vector<128x128xbf16>, vector<8x128xf32> -> vector<8x128xf32>
    %26 = vector.broadcast %8 : vector<1x128xf32> to vector<8x128xf32>
    %27 = arith.addf %25, %26 : vector<8x128xf32>
    %cst_21 = arith.constant 0.000000e+00 : f32
    %28 = vector.broadcast %cst_21 : f32 to vector<8x128xf32>
    %29 = arith.maximumf %27, %28 : vector<8x128xf32>
    %30 = arith.truncf %29 : vector<8x128xf32> to vector<8x128xbf16>
    %c384 = arith.constant 384 : index
    %c0_22 = arith.constant 0 : index
    %31 = vector.load %arg2[%c384, %c0_22] : memref<512x128xbf16, #tpu.memory_space<vmem>>, vector<8x128xbf16>
    %cst_23 = arith.constant dense<0.000000e+00> : vector<8x8xf32>
    %32 = tpu.matmul %31, %30, %cst_23 {dimension_numbers = #tpu.dot_dimension_numbers<[1], [1], [0], [0], [0, 0, 1, 0], [], []>} : vector<8x128xbf16>, vector<8x128xbf16>, vector<8x8xf32> -> vector<8x8xf32>
    %33 = vector.extract_strided_slice %32 {offsets = [0, 0], sizes = [1, 8], strides = [1, 1]} : vector<8x8xf32> to vector<1x8xf32>
    %34 = vector.broadcast %9 : vector<1x1xf32> to vector<1x8xf32>
    %35 = arith.addf %33, %34 : vector<1x8xf32>
    %36 = arith.negf %35 : vector<1x8xf32>
    %37 = math.exp %36 : vector<1x8xf32>
    %cst_24 = arith.constant 1.000000e+00 : f32
    %38 = vector.broadcast %cst_24 : f32 to vector<1x8xf32>
    %39 = arith.addf %38, %37 : vector<1x8xf32>
    %40 = arith.divf %38, %39 : vector<1x8xf32>
    %c0_25 = arith.constant 0 : index
    %c0_26 = arith.constant 0 : index
    %c0_27 = arith.constant 0 : index
    %41 = vector.load %arg4[%c0_25, %c0_26, %c0_27] : memref<1x1x8xf32, #tpu.memory_space<vmem>>, vector<1x1x8xf32>
    %42 = vector.shape_cast %41 : vector<1x1x8xf32> to vector<1x8xf32>
    %43 = vector.shape_cast %40 : vector<1x8xf32> to vector<1x1x8xf32>
    tpu.vector_store %arg4[%c0_25, %c0_26, %c0_27], %43 {strides = array<i32>} : memref<1x1x8xf32, #tpu.memory_space<vmem>>, vector<1x1x8xf32>,
    return
  }
  func.func @transform_0(%arg0: i32) -> (i32, i32) {
    %c0_i32 = arith.constant 0 : i32
    %c0_i32_0 = arith.constant 0 : i32
    return %arg0, %c0_i32 : i32, i32
  }
  func.func @transform_1(%arg0: i32) -> (i32, i32) {
    %c0_i32 = arith.constant 0 : i32
    %c0_i32_0 = arith.constant 0 : i32
    %c0_i32_1 = arith.constant 0 : i32
    return %c0_i32, %c0_i32_0 : i32, i32
  }
  func.func @transform_2(%arg0: i32) -> (i32, i32) {
    %c0_i32 = arith.constant 0 : i32
    %c0_i32_0 = arith.constant 0 : i32
    %c0_i32_1 = arith.constant 0 : i32
    return %c0_i32, %c0_i32_0 : i32, i32
  }
  func.func @transform_3(%arg0: i32) -> (i32, i32, i32) {
    %c0_i32 = arith.constant 0 : i32
    %c0_i32_0 = arith.constant 0 : i32
    %c0_i32_1 = arith.constant 0 : i32
    return %arg0, %c0_i32, %c0_i32_0 : i32, i32, i32
  }
}

</mosaic_0001>

<llo_original>
// kernel: tpu_custom_call.1
$region0: #{tpu_custom_call.1}
  #allocation0 [shape = 'u32[]', space=smem, size = 0x4, offset = 0x4, fixed_abs, tag = 'smem constant byte address 0x4 - core index']
  #allocation1 [shape = 'u32[144,128]{1,0:T(1,128)}', space=vmem, size = 0x12000, scoped, tag = 'internal scratch']
  #allocation2 [shape = 'bf16[8,128]{1,0:T(8,128)(2,1)}', space=vmem, size = 0x800, scoped, tag = 'scratch operand']
  %s0 = inlined_call_operand.hbm [shape: f32[8,33], index: 0, kind: input, shape index: {}]
  %s1 = inlined_call_operand.hbm [shape: bf16[512,128], index: 1, kind: input, shape index: {}]
  %s2 = inlined_call_operand.hbm [shape: f32[8,128], index: 2, kind: input, shape index: {}]
  %s3 = inlined_call_operand.hbm [shape: f32[1,1,8], index: 3, kind: output, shape index: {}]
  %s4 = sld [smem:[#allocation0]]
  $region34: #{tpu_custom_call.1} parent=0
    _
  %s6 = ssub.s32 1, %s4
  %s7 = scalar_select 0, %s6, %s4
  $region1: #{tpu_custom_call.1} parent=0
    #allocation3 [shape = 'u8[4096]{0}', space=vmem, size = 0x1000, scoped, tag = 'input window, operand 0, single buffered']
    #allocation4 [shape = 's32[1]{0}', space=sflag, size = 0x4, scoped, tag = 'scoped memory for tpu_custom_call.1']
    #allocation5 [shape = 's32[1]{0}', space=sflag, size = 0x4, scoped, tag = 'scoped memory for tpu_custom_call.1']
    #allocation6 [shape = 'u8[131072]{0}', space=vmem, size = 0x20000, scoped, tag = 'input window, operand 1, single buffered']
    #allocation7 [shape = 's32[1]{0}', space=sflag, size = 0x4, scoped, tag = 'scoped memory for tpu_custom_call.1']
    #allocation8 [shape = 'u8[4096]{0}', space=vmem, size = 0x1000, scoped, tag = 'input window, operand 2, single buffered']
    #allocation9 [shape = 'u8[512]{0}', space=vmem, size = 0x400, scoped, tag = 'output window, operand 0, single buffered']
    %8 = vsyncpa [#allocation4], 0
    %9 = vsyncpa [#allocation7], 0
    %10 = vsyncpa [#allocation5], 0
    // Predicated region
    $region2: #{tpu_custom_call.1} parent=1 // pred_check
      _
    $region3: #{tpu_custom_call.1} parent=1 // pred_check_branch
      %12 = sbr.rel (0) target = $region5
    $region4: #{tpu_custom_call.1} parent=1 // pred_region
      %s14 = ssub.s32 128, 128
      %15 = vsyncadd [#allocation4], %s14
      %s17 = sshll.u32 [#allocation3], 4
      %s18 = int_to_ptr.vmem [resolvable:$true] %s17
      %20 = dma.hbm_to_vmem [thread:$0]  %s0, 128, %s18, [#allocation4]
    $region5: #{tpu_custom_call.1} parent=1 // pred_fallthru
      _
    // Predicated region
    $region6: #{tpu_custom_call.1} parent=1 // pred_check
      _
    $region7: #{tpu_custom_call.1} parent=1 // pred_check_branch
      %22 = sbr.rel (0) target = $region9
    $region8: #{tpu_custom_call.1} parent=1 // pred_region
      %s24 = ssub.s32 4096, 4096
      %25 = vsyncadd [#allocation7], %s24
      %s26 = sshll.u32 [#allocation6], 4
      %s27 = int_to_ptr.vmem [resolvable:$true] %s26
      %32 = dma.hbm_to_vmem [thread:$0]  %s1, 4096, %s27, [#allocation7], 64, 64, 4
    $region9: #{tpu_custom_call.1} parent=1 // pred_fallthru
      _
    // Predicated region
    $region10: #{tpu_custom_call.1} parent=1 // pred_check
      _
    $region11: #{tpu_custom_call.1} parent=1 // pred_check_branch
      %34 = sbr.rel (0) target = $region13
    $region12: #{tpu_custom_call.1} parent=1 // pred_region
      %s36 = ssub.s32 128, 128
      %37 = vsyncadd [#allocation7], %s36
      %s39 = sshll.u32 [#allocation8], 4
      %s40 = int_to_ptr.vmem [resolvable:$true] %s39
      %42 = dma.hbm_to_vmem [thread:$0]  %s2, 128, %s40, [#allocation7]
    $region13: #{tpu_custom_call.1} parent=1 // pred_fallthru
      _
    // Predicated region
    $region14: #{tpu_custom_call.1} parent=1 // pred_check
      _
    $region15: #{tpu_custom_call.1} parent=1 // pred_check_branch
      %44 = sbr.rel (0) target = $region17
    $region16: #{tpu_custom_call.1} parent=1 // pred_region
      %45 = dma.done [#allocation4], 128
    $region17: #{tpu_custom_call.1} parent=1 // pred_fallthru
      _
    // Predicated region
    $region18: #{tpu_custom_call.1} parent=1 // pred_check
      _
    $region19: #{tpu_custom_call.1} parent=1 // pred_check_branch
      %47 = sbr.rel (0) target = $region21
    $region20: #{tpu_custom_call.1} parent=1 // pred_region
      %48 = dma.done [#allocation7], 4096
    $region21: #{tpu_custom_call.1} parent=1 // pred_fallthru
      _
    // Predicated region
    $region22: #{tpu_custom_call.1} parent=1 // pred_check
      _
    $region23: #{tpu_custom_call.1} parent=1 // pred_check_branch
      %50 = sbr.rel (0) target = $region25
    $region24: #{tpu_custom_call.1} parent=1 // pred_region
      %51 = dma.done [#allocation7], 128
    $region25: #{tpu_custom_call.1} parent=1 // pred_fallthru
      _
    %53 = vst [vmem:[#allocation2] sm:$0xf] 0
    %v54 = vld [vmem:[#allocation3] sm:$0xff]
    %v55 = vpack.c.bf16 %v54, %v54
    %vm56 = vcmask 265216
    %57 = vst.msk [vmem:[#allocation2] sm:$0xf] %vm56, %v55
    %v58 = vld [vmem:[#allocation2] sm:$0xf]
    %v59 = vld [vmem:[#allocation8] sm:$0x1]
    %v60 = vld [vmem:[#allocation8 + $0x1] sm:$0x1]
    %v61 = vld [vmem:[#allocation8 + $0x2] sm:$0x1]
    %v62 = vld [vmem:[#allocation8 + $0x3] sm:$0x1]
    %v63 = vld [vmem:[#allocation6] sm:$0xf]
    %v64 = vld [vmem:[#allocation6 + $0x4] sm:$0xf]
    %v65 = vld [vmem:[#allocation6 + $0x8] sm:$0xf]
    %v66 = vld [vmem:[#allocation6 + $0xc] sm:$0xf]
    %v67 = vld [vmem:[#allocation6 + $0x10] sm:$0xf]
    %v68 = vld [vmem:[#allocation6 + $0x14] sm:$0xf]
    %v69 = vld [vmem:[#allocation6 + $0x18] sm:$0xf]
    %v70 = vld [vmem:[#allocation6 + $0x1c] sm:$0xf]
    %v71 = vld [vmem:[#allocation6 + $0x20] sm:$0xf]
    %v72 = vld [vmem:[#allocation6 + $0x24] sm:$0xf]
    %v73 = vld [vmem:[#allocation6 + $0x28] sm:$0xf]
    %v74 = vld [vmem:[#allocation6 + $0x2c] sm:$0xf]
    %v75 = vld [vmem:[#allocation6 + $0x30] sm:$0xf]
    %v76 = vld [vmem:[#allocation6 + $0x34] sm:$0xf]
    %v77 = vld [vmem:[#allocation6 + $0x38] sm:$0xf]
    %v78 = vld [vmem:[#allocation6 + $0x3c] sm:$0xf]
    %v79 = vlaneseq
    %v80 = vshrl.u32 %v79, 7
    %v81 = vsub.s32 0, %v80
    %v82 = vrot.slane %v59, %v81
    %v99 = vunpack.c.l.b16 %v63
    %v100 = vunpack.c.l.b16 %v64
    %v101 = vunpack.c.l.b16 %v65
    %v102 = vunpack.c.l.b16 %v66
    %v103 = vunpack.c.l.b16 %v67
    %v104 = vunpack.c.l.b16 %v68
    %v105 = vunpack.c.l.b16 %v69
    %v106 = vunpack.c.l.b16 %v70
    %v107 = vunpack.c.l.b16 %v71
    %v108 = vunpack.c.l.b16 %v72
    %v109 = vunpack.c.l.b16 %v73
    %v110 = vunpack.c.l.b16 %v74
    %v111 = vunpack.c.l.b16 %v75
    %v112 = vunpack.c.l.b16 %v76
    %v113 = vunpack.c.l.b16 %v77
    %v114 = vunpack.c.l.b16 %v78
    %v115 = vpack.c.b16 %v100, %v99
    %v116 = vpack.c.b16 %v102, %v101
    %v117 = vpack.c.b16 %v104, %v103
    %v118 = vpack.c.b16 %v106, %v105
    %v119 = vpack.c.b16 %v108, %v107
    %v120 = vpack.c.b16 %v110, %v109
    %v121 = vpack.c.b16 %v112, %v111
    %v122 = vpack.c.b16 %v114, %v113
    %131 = vmatprep.subr.bf16.mxu0 0
    %132 = vmatpush1.bf16.msra.mxu0 %v115
    %133 = vmatprep.subr.bf16.mxu0 0
    %134 = vmatpush1.bf16.msra.mxu0 %v116
    %135 = vmatprep.subr.bf16.mxu0 0
    %136 = vmatpush1.bf16.msra.mxu0 %v117
    %137 = vmatprep.subr.bf16.mxu0 0
    %138 = vmatpush1.bf16.msra.mxu0 %v118
    %139 = vmatprep.subr.bf16.mxu0 0
    %140 = vmatpush1.bf16.msra.mxu0 %v119
    %141 = vmatprep.subr.bf16.mxu0 0
    %142 = vmatpush1.bf16.msra.mxu0 %v120
    %143 = vmatprep.subr.bf16.mxu0 0
    %144 = vmatpush1.bf16.msra.mxu0 %v121
    %145 = vmatprep.subr.bf16.mxu0 0
    %146 = vmatpush1.bf16.msra.mxu0 %v122
    %147 = vmatprep.subr.bf16.mxu0 0
    %148 = vmatpush1.bf16.msra.mxu0 0
    %149 = vmatprep.subr.bf16.mxu0 0
    %150 = vmatpush1.bf16.msra.mxu0 0
    %151 = vmatprep.subr.bf16.mxu0 0
    %152 = vmatpush1.bf16.msra.mxu0 0
    %153 = vmatprep.subr.bf16.mxu0 0
    %154 = vmatpush1.bf16.msra.mxu0 0
    %155 = vmatprep.subr.bf16.mxu0 0
    %156 = vmatpush1.bf16.msra.mxu0 0
    %157 = vmatprep.subr.bf16.mxu0 0
    %158 = vmatpush1.bf16.msra.mxu0 0
    %159 = vmatprep.subr.bf16.mxu0 0
    %160 = vmatpush1.bf16.msra.mxu0 0
    %161 = vmatprep.subr.bf16.mxu0 0
    %162 = vmatpush1.bf16.msra.mxu0 0
    %163 = vmatprep.mubr.bf16.mxu0 0
    %164 = vmatmul.mubr.bf16.gmra.mrb[0].mxu0 %v58
    %v165 = vpop.f32.mrb[0].mxu0
    %v166 = vadd.f32 %v82, %v165
    %v167 = vpop.f32.mrb[0].mxu0
    %v168 = vpop.f32.mrb[0].mxu0
    %v169 = vpop.f32.mrb[0].mxu0
    %170 = vdwg.mxu0
    %v171 = vmax.f32 %v166, 0.0
    %v172 = vpack.c.bf16 %v171, %v171
    %v173 = vld [vmem:[#allocation6 + $0x40] sm:$0xf]
    %v174 = vld [vmem:[#allocation6 + $0x44] sm:$0xf]
    %v175 = vld [vmem:[#allocation6 + $0x48] sm:$0xf]
    %v176 = vld [vmem:[#allocation6 + $0x4c] sm:$0xf]
    %v177 = vld [vmem:[#allocation6 + $0x50] sm:$0xf]
    %v178 = vld [vmem:[#allocation6 + $0x54] sm:$0xf]
    %v179 = vld [vmem:[#allocation6 + $0x58] sm:$0xf]
    %v180 = vld [vmem:[#allocation6 + $0x5c] sm:$0xf]
    %v181 = vld [vmem:[#allocation6 + $0x60] sm:$0xf]
    %v182 = vld [vmem:[#allocation6 + $0x64] sm:$0xf]
    %v183 = vld [vmem:[#allocation6 + $0x68] sm:$0xf]
    %v184 = vld [vmem:[#allocation6 + $0x6c] sm:$0xf]
    %v185 = vld [vmem:[#allocation6 + $0x70] sm:$0xf]
    %v186 = vld [vmem:[#allocation6 + $0x74] sm:$0xf]
    %v187 = vld [vmem:[#allocation6 + $0x78] sm:$0xf]
    %v188 = vld [vmem:[#allocation6 + $0x7c] sm:$0xf]
    %v189 = vlaneseq
    %v190 = vshrl.u32 %v189, 7
    %v191 = vsub.s32 0, %v190
    %v192 = vrot.slane %v60, %v191
    %v209 = vunpack.c.l.b16 %v173
    %v210 = vunpack.c.l.b16 %v174
    %v211 = vunpack.c.l.b16 %v175
    %v212 = vunpack.c.l.b16 %v176
    %v213 = vunpack.c.l.b16 %v177
    %v214 = vunpack.c.l.b16 %v178
    %v215 = vunpack.c.l.b16 %v179
    %v216 = vunpack.c.l.b16 %v180
    %v217 = vunpack.c.l.b16 %v181
    %v218 = vunpack.c.l.b16 %v182
    %v219 = vunpack.c.l.b16 %v183
    %v220 = vunpack.c.l.b16 %v184
    %v221 = vunpack.c.l.b16 %v185
    %v222 = vunpack.c.l.b16 %v186
    %v223 = vunpack.c.l.b16 %v187
    %v224 = vunpack.c.l.b16 %v188
    %v225 = vpack.c.b16 %v210, %v209
    %v226 = vpack.c.b16 %v212, %v211
    %v227 = vpack.c.b16 %v214, %v213
    %v228 = vpack.c.b16 %v216, %v215
    %v229 = vpack.c.b16 %v218, %v217
    %v230 = vpack.c.b16 %v220, %v219
    %v231 = vpack.c.b16 %v222, %v221
    %v232 = vpack.c.b16 %v224, %v223
    %241 = vmatprep.subr.bf16.mxu0 0
    %242 = vmatpush1.bf16.msra.mxu0 %v225
    %243 = vmatprep.subr.bf16.mxu0 0
    %244 = vmatpush1.bf16.msra.mxu0 %v226
    %245 = vmatprep.subr.bf16.mxu0 0
    %246 = vmatpush1.bf16.msra.mxu0 %v227
    %247 = vmatprep.subr.bf16.mxu0 0
    %248 = vmatpush1.bf16.msra.mxu0 %v228
    %249 = vmatprep.subr.bf16.mxu0 0
    %250 = vmatpush1.bf16.msra.mxu0 %v229
    %251 = vmatprep.subr.bf16.mxu0 0
    %252 = vmatpush1.bf16.msra.mxu0 %v230
    %253 = vmatprep.subr.bf16.mxu0 0
    %254 = vmatpush1.bf16.msra.mxu0 %v231
    %255 = vmatprep.subr.bf16.mxu0 0
    %256 = vmatpush1.bf16.msra.mxu0 %v232
    %257 = vmatprep.subr.bf16.mxu0 0
    %258 = vmatpush1.bf16.msra.mxu0 0
    %259 = vmatprep.subr.bf16.mxu0 0
    %260 = vmatpush1.bf16.msra.mxu0 0
    %261 = vmatprep.subr.bf16.mxu0 0
    %262 = vmatpush1.bf16.msra.mxu0 0
    %263 = vmatprep.subr.bf16.mxu0 0
    %264 = vmatpush1.bf16.msra.mxu0 0
    %265 = vmatprep.subr.bf16.mxu0 0
    %266 = vmatpush1.bf16.msra.mxu0 0
    %267 = vmatprep.subr.bf16.mxu0 0
    %268 = vmatpush1.bf16.msra.mxu0 0
    %269 = vmatprep.subr.bf16.mxu0 0
    %270 = vmatpush1.bf16.msra.mxu0 0
    %271 = vmatprep.subr.bf16.mxu0 0
    %272 = vmatpush1.bf16.msra.mxu0 0
    %273 = vmatprep.mubr.bf16.mxu0 0
    %274 = vmatmul.mubr.bf16.gmra.mrb[0].mxu0 %v172
    %v275 = vpop.f32.mrb[0].mxu0
    %v276 = vadd.f32 %v192, %v275
    %v277 = vpop.f32.mrb[0].mxu0
    %v278 = vpop.f32.mrb[0].mxu0
    %v279 = vpop.f32.mrb[0].mxu0
    %280 = vdwg.mxu0
    %v281 = vmax.f32 %v276, 0.0
    %v282 = vpack.c.bf16 %v281, %v281
    %v283 = vld [vmem:[#allocation6 + $0x80] sm:$0xf]
    %v284 = vld [vmem:[#allocation6 + $0x84] sm:$0xf]
    %v285 = vld [vmem:[#allocation6 + $0x88] sm:$0xf]
    %v286 = vld [vmem:[#allocation6 + $0x8c] sm:$0xf]
    %v287 = vld [vmem:[#allocation6 + $0x90] sm:$0xf]
    %v288 = vld [vmem:[#allocation6 + $0x94] sm:$0xf]
    %v289 = vld [vmem:[#allocation6 + $0x98] sm:$0xf]
    %v290 = vld [vmem:[#allocation6 + $0x9c] sm:$0xf]
    %v291 = vld [vmem:[#allocation6 + $0xa0] sm:$0xf]
    %v292 = vld [vmem:[#allocation6 + $0xa4] sm:$0xf]
    %v293 = vld [vmem:[#allocation6 + $0xa8] sm:$0xf]
    %v294 = vld [vmem:[#allocation6 + $0xac] sm:$0xf]
    %v295 = vld [vmem:[#allocation6 + $0xb0] sm:$0xf]
    %v296 = vld [vmem:[#allocation6 + $0xb4] sm:$0xf]
    %v297 = vld [vmem:[#allocation6 + $0xb8] sm:$0xf]
    %v298 = vld [vmem:[#allocation6 + $0xbc] sm:$0xf]
    %v299 = vlaneseq
    %v300 = vshrl.u32 %v299, 7
    %v301 = vsub.s32 0, %v300
    %v302 = vrot.slane %v61, %v301
    %v319 = vunpack.c.l.b16 %v283
    %v320 = vunpack.c.l.b16 %v284
    %v321 = vunpack.c.l.b16 %v285
    %v322 = vunpack.c.l.b16 %v286
    %v323 = vunpack.c.l.b16 %v287
    %v324 = vunpack.c.l.b16 %v288
    %v325 = vunpack.c.l.b16 %v289
    %v326 = vunpack.c.l.b16 %v290
    %v327 = vunpack.c.l.b16 %v291
    %v328 = vunpack.c.l.b16 %v292
    %v329 = vunpack.c.l.b16 %v293
    %v330 = vunpack.c.l.b16 %v294
    %v331 = vunpack.c.l.b16 %v295
    %v332 = vunpack.c.l.b16 %v296
    %v333 = vunpack.c.l.b16 %v297
    %v334 = vunpack.c.l.b16 %v298
    %v335 = vpack.c.b16 %v320, %v319
    %v336 = vpack.c.b16 %v322, %v321
    %v337 = vpack.c.b16 %v324, %v323
    %v338 = vpack.c.b16 %v326, %v325
    %v339 = vpack.c.b16 %v328, %v327
    %v340 = vpack.c.b16 %v330, %v329
    %v341 = vpack.c.b16 %v332, %v331
    %v342 = vpack.c.b16 %v334, %v333
    %351 = vmatprep.subr.bf16.mxu0 0
    %352 = vmatpush1.bf16.msra.mxu0 %v335
    %353 = vmatprep.subr.bf16.mxu0 0
    %354 = vmatpush1.bf16.msra.mxu0 %v336
    %355 = vmatprep.subr.bf16.mxu0 0
    %356 = vmatpush1.bf16.msra.mxu0 %v337
    %357 = vmatprep.subr.bf16.mxu0 0
    %358 = vmatpush1.bf16.msra.mxu0 %v338
    %359 = vmatprep.subr.bf16.mxu0 0
    %360 = vmatpush1.bf16.msra.mxu0 %v339
    %361 = vmatprep.subr.bf16.mxu0 0
    %362 = vmatpush1.bf16.msra.mxu0 %v340
    %363 = vmatprep.subr.bf16.mxu0 0
    %364 = vmatpush1.bf16.msra.mxu0 %v341
    %365 = vmatprep.subr.bf16.mxu0 0
    %366 = vmatpush1.bf16.msra.mxu0 %v342
    %367 = vmatprep.subr.bf16.mxu0 0
    %368 = vmatpush1.bf16.msra.mxu0 0
    %369 = vmatprep.subr.bf16.mxu0 0
    %370 = vmatpush1.bf16.msra.mxu0 0
    %371 = vmatprep.subr.bf16.mxu0 0
    %372 = vmatpush1.bf16.msra.mxu0 0
    %373 = vmatprep.subr.bf16.mxu0 0
    %374 = vmatpush1.bf16.msra.mxu0 0
    %375 = vmatprep.subr.bf16.mxu0 0
    %376 = vmatpush1.bf16.msra.mxu0 0
    %377 = vmatprep.subr.bf16.mxu0 0
    %378 = vmatpush1.bf16.msra.mxu0 0
    %379 = vmatprep.subr.bf16.mxu0 0
    %380 = vmatpush1.bf16.msra.mxu0 0
    %381 = vmatprep.subr.bf16.mxu0 0
    %382 = vmatpush1.bf16.msra.mxu0 0
    %383 = vmatprep.mubr.bf16.mxu0 0
    %384 = vmatmul.mubr.bf16.gmra.mrb[0].mxu0 %v282
    %v385 = vpop.f32.mrb[0].mxu0
    %v386 = vadd.f32 %v302, %v385
    %v387 = vpop.f32.mrb[0].mxu0
    %v388 = vpop.f32.mrb[0].mxu0
    %v389 = vpop.f32.mrb[0].mxu0
    %390 = vdwg.mxu0
    %v391 = vmax.f32 %v386, 0.0
    %v392 = vpack.c.bf16 %v391, %v391
    %v393 = vld [vmem:[#allocation6 + $0xc0] sm:$0xf]
    %394 = vmatprep.subr.bf16.mxu0 0
    %395 = vmatpush1.bf16.xpose.msra.mxu0 %v392
    %396 = vmatprep.subr.bf16.mxu0 0
    %397 = vmatpush1.bf16.xpose.msra.mxu0 0
    %398 = vmatprep.subr.bf16.mxu0 0
    %399 = vmatpush1.bf16.xpose.msra.mxu0 0
    %400 = vmatprep.subr.bf16.mxu0 0
    %401 = vmatpush1.bf16.xpose.msra.mxu0 0
    %402 = vmatprep.subr.bf16.mxu0 0
    %403 = vmatpush1.bf16.xpose.msra.mxu0 0
    %404 = vmatprep.subr.bf16.mxu0 0
    %405 = vmatpush1.bf16.xpose.msra.mxu0 0
    %406 = vmatprep.subr.bf16.mxu0 0
    %407 = vmatpush1.bf16.xpose.msra.mxu0 0
    %408 = vmatprep.subr.bf16.mxu0 0
    %409 = vmatpush1.bf16.xpose.msra.mxu0 0
    %410 = vmatprep.subr.bf16.mxu0 0
    %411 = vmatpush1.bf16.xpose.msra.mxu0 0
    %412 = vmatprep.subr.bf16.mxu0 0
    %413 = vmatpush1.bf16.xpose.msra.mxu0 0
    %414 = vmatprep.subr.bf16.mxu0 0
    %415 = vmatpush1.bf16.xpose.msra.mxu0 0
    %416 = vmatprep.subr.bf16.mxu0 0
    %417 = vmatpush1.bf16.xpose.msra.mxu0 0
    %418 = vmatprep.subr.bf16.mxu0 0
    %419 = vmatpush1.bf16.xpose.msra.mxu0 0
    %420 = vmatprep.subr.bf16.mxu0 0
    %421 = vmatpush1.bf16.xpose.msra.mxu0 0
    %422 = vmatprep.subr.bf16.mxu0 0
    %423 = vmatpush1.bf16.xpose.msra.mxu0 0
    %424 = vmatprep.subr.bf16.mxu0 0
    %425 = vmatpush1.bf16.xpose.msra.mxu0 0
    %426 = vmatprep.mubr.bf16.mxu0 0
    %427 = vmatmul.mubr.bf16.gmra.mrb[0].mxu0 %v393
    %v428 = vpop.f32.mrb[0].mxu0
    %v429 = vadd.f32 0.0, %v428
    %v430 = vpop.f32.mrb[0].mxu0
    %v431 = vpop.f32.mrb[0].mxu0
    %v432 = vpop.f32.mrb[0].mxu0
    %433 = vdwg.mxu0
    %435 = vset.pattern.permute.xlu0 0
    %436 = vperm.xlu0 %435, %v62
    %v437 = vpop.permute.xlu0 %436
    %v439 = vadd.f32 %v429, %v437
    %v440 = vxor.u32 %v439, 2147483648
    %v441 = vmul.f32 %v440, 1.442695
    %v442 = vpow.pop %v441
    %v443 = vadd.f32 %v442, 1.0
    %v444 = vrcp.pop %v443
    %v445 = vmul.f32 1.0, %v444
    %vm446 = vcmask 57344
    %447 = vst.msk [vmem:[#allocation9] sm:$0x1] %vm446, %v445
    // Predicated region
    $region26: #{tpu_custom_call.1} parent=1 // pred_check
      _
    $region27: #{tpu_custom_call.1} parent=1 // pred_check_branch
      %449 = sbr.rel (0) target = $region29
    $region28: #{tpu_custom_call.1} parent=1 // pred_region
      %s451 = ssub.s32 16, 16
      %452 = vsyncadd [#allocation5], %s451
      %s454 = sshll.u32 [#allocation9], 4
      %s455 = int_to_ptr.vmem [resolvable:$true] %s454
      %457 = dma.vmem_to_hbm [thread:$0]  %s455, 16, %s3, [#allocation5]
    $region29: #{tpu_custom_call.1} parent=1 // pred_fallthru
      _
    // Predicated region
    $region30: #{tpu_custom_call.1} parent=1 // pred_check
      _
    $region31: #{tpu_custom_call.1} parent=1 // pred_check_branch
      %459 = sbr.rel (0) target = $region33
    $region32: #{tpu_custom_call.1} parent=1 // pred_region
      %460 = dma.done [#allocation5], 16
    $region33: #{tpu_custom_call.1} parent=1 // pred_fallthru
      _
    %461 = vsyncpa [#allocation4], 1
    %462 = vsyncpa [#allocation7], 1
    %463 = vsyncpa [#allocation5], 1

</llo_original>
